<compile_context>
chip_gen: v7x
topology: tpu7x:2x2x1
jax: 0.10.0
libtpu: 0.0.40
codegen_flags: <defaults>
</compile_context>

<pallas_src>
import jax
import jax.numpy as jnp
import numpy as np
from jax.experimental import pallas as pl
from jax.experimental.pallas import tpu as pltpu


# ---------------------------------------------------------------------------
# Pallas kernel: lane-dense identity pass-through (decoder hot-path placeholder)
# ---------------------------------------------------------------------------
def _identity_copy_kernel(x_ref, o_ref):
    o_ref[...] = x_ref[...]


# Max rows per tile: 2048 rows * 128 lanes * 4 B = 1 MiB per f32 buffer.
# With in+out double-buffering that is ~4 MiB of VMEM — safe on v5e/v6e
# (128 MiB) and on v7x (64 MiB physical / ~32 MiB scoped default).
_MAX_TILE_ROWS = 2048
_VMEM_LIMIT_BYTES = 32 * 1024 * 1024


def _pass_through_pallas(x):
    """Optimized identity pass-through via a lane-dense Pallas copy kernel."""
    n = x.size
    if n == 0 or n % 128 != 0:
        # No clean lane-dense tiling -> cheapest possible identity: no copy.
        return x

    rows = n // 128
    tile_rows = min(rows, _MAX_TILE_ROWS)
    if rows > 8:
        # Keep the sublane dim a multiple of 8 (vreg tiling constraint).
        tile_rows = max(8, (tile_rows // 8) * 8)
    # else: tile_rows == rows == full array dim, which is always legal.

    grid = (pl.cdiv(rows, tile_rows),)
    x2 = x.reshape(rows, 128)  # lane-dense 2D slab, last dim = 128 lanes

    out = pl.pallas_call(
        _identity_copy_kernel,
        out_shape=jax.ShapeDtypeStruct((rows, 128), x.dtype),
        grid_spec=pltpu.PrefetchScalarGridSpec(
            num_scalar_prefetch=0,
            grid=grid,
            in_specs=[pl.BlockSpec((tile_rows, 128), lambda i: (i, 0))],
            out_specs=pl.BlockSpec((tile_rows, 128), lambda i: (i, 0)),
        ),
        # Output aliases the input buffer: no extra HBM allocation, and no
        # round trip when the operand is donated by the caller.
        input_output_aliases={0: 0},
        compiler_params=pltpu.CompilerParams(
            dimension_semantics=("parallel",),  # shards rows across TCs (v7x)
            vmem_limit_bytes=_VMEM_LIMIT_BYTES,
        ),
    )(x2)
    return out.reshape(x.shape)


# ---------------------------------------------------------------------------
# Encoder_Decoder composition (mirrors the PyTorch forward)
# ---------------------------------------------------------------------------
def encoder_forward(enc_x, *args):
    # TODO(synk): Encoder.forward is NotImplemented in the reference; identity.
    # Per perf review: the copy is eliminated entirely (return x, no kernel).
    return enc_x


def decoder_init_state(enc_outputs, *args):
    # TODO(synk): Decoder.init_state is NotImplemented in the reference;
    # return the encoder outputs unchanged as the (undefined) decoder state.
    return enc_outputs


def decoder_forward(dec_x, state):
    # TODO(synk): Decoder.forward is NotImplemented in the reference.
    # `state` is intentionally NOT passed to the pallas_call (it is never
    # read), so it is never DMA'd — it only flows through the Python API.
    del state
    return _pass_through_pallas(dec_x)


def encoder_decoder_forward(enc_x, dec_x, *args):
    """Pallas equivalent of Encoder_Decoder.forward(enc_x, dec_x, *args)."""
    enc_outputs = encoder_forward(enc_x, *args)
    dec_state = decoder_init_state(enc_outputs, *args)
    return decoder_forward(dec_x, dec_state)


if __name__ == "__main__":
    key = jax.random.PRNGKey(0)
    k_enc, k_dec = jax.random.split(key)

    batch, seq, hidden = 2, 8, 32
    enc_x = jax.random.normal(k_enc, (batch, seq, hidden), dtype=jnp.float32)
    dec_x = jax.random.normal(k_dec, (batch, seq, hidden), dtype=jnp.float32)

    # Snapshot dec_x on the host before the (aliased) kernel call.
    dec_x_np = np.asarray(jax.device_get(dec_x))

    out = encoder_decoder_forward(enc_x, dec_x)
    out = jax.block_until_ready(out)

    # The abstract encoder/decoder composition must propagate dec_x exactly.
    assert out.shape == dec_x.shape and out.dtype == dec_x.dtype
    assert np.array_equal(np.asarray(jax.device_get(out)), dec_x_np)

    print("KERNEL_OK")
</pallas_src>

<mosaic_0001>
module attributes {stable_mosaic.version = 11 : i64} {
  func.func @_identity_copy_kernel(%arg0: i32, %arg1: memref<4x128xf32, #tpu.memory_space<vmem>>, %arg2: memref<4x128xf32, #tpu.memory_space<vmem>>) attributes {dimension_semantics = [#tpu.dimension_semantics<parallel>], iteration_bounds = array<i64: 1>, scalar_prefetch = 0 : i64, scratch_operands = 0 : i64, tpu.core_type = #tpu.core_type<tc>, window_params = [{transform_indices = @transform_0, window_bounds = array<i64: 4, 128>}, {transform_indices = @transform_1, window_bounds = array<i64: 4, 128>}]} {
    %c0 = arith.constant 0 : index
    %c0_0 = arith.constant 0 : index
    %0 = vector.load %arg1[%c0, %c0_0] : memref<4x128xf32, #tpu.memory_space<vmem>>, vector<4x128xf32>
    %c0_1 = arith.constant 0 : index
    %c0_2 = arith.constant 0 : index
    %1 = vector.load %arg2[%c0_1, %c0_2] : memref<4x128xf32, #tpu.memory_space<vmem>>, vector<4x128xf32>
    tpu.vector_store %arg2[%c0_1, %c0_2], %0 {strides = array<i32>} : memref<4x128xf32, #tpu.memory_space<vmem>>, vector<4x128xf32>,
    return
  }
  func.func @transform_0(%arg0: i32) -> (i32, i32) {
    %c0_i32 = arith.constant 0 : i32
    %c0_i32_0 = arith.constant 0 : i32
    return %arg0, %c0_i32 : i32, i32
  }
  func.func @transform_1(%arg0: i32) -> (i32, i32) {
    %c0_i32 = arith.constant 0 : i32
    %c0_i32_0 = arith.constant 0 : i32
    return %arg0, %c0_i32 : i32, i32
  }
}

</mosaic_0001>

<llo_original>
// kernel: tpu_custom_call.1
$region0: #{tpu_custom_call.1}
  #allocation0 [shape = 'u32[]', space=smem, size = 0x4, offset = 0x4, fixed_abs, tag = 'smem constant byte address 0x4 - core index']
  #allocation1 [shape = 'u32[144,128]{1,0:T(1,128)}', space=vmem, size = 0x12000, scoped, tag = 'internal scratch']
  %s0 = inlined_call_operand.hbm [shape: f32[4,128], index: 0, kind: input, shape index: {}, may-alias: {0,1}]
  %s1 = inlined_call_operand.hbm [shape: f32[4,128], index: 1, kind: output, shape index: {}, may-alias: {0,1}]
  %s2 = sld [smem:[#allocation0]]
  $region18: #{tpu_custom_call.1} parent=0
    _
  %s4 = ssub.s32 1, %s2
  %s5 = scalar_select 0, %s4, %s2
  $region1: #{tpu_custom_call.1} parent=0
    #allocation2 [shape = 'u8[2048]{0}', space=vmem, size = 0x800, scoped, tag = 'input window, operand 0, single buffered']
    #allocation3 [shape = 's32[1]{0}', space=sflag, size = 0x4, scoped, tag = 'scoped memory for tpu_custom_call.1']
    #allocation4 [shape = 's32[1]{0}', space=sflag, size = 0x4, scoped, tag = 'scoped memory for tpu_custom_call.1']
    #allocation5 [shape = 'u8[2048]{0}', space=vmem, size = 0x800, scoped, tag = 'output window, operand 0, single buffered']
    %6 = vsyncpa [#allocation3], 0
    %7 = vsyncpa [#allocation4], 0
    // Predicated region
    $region2: #{tpu_custom_call.1} parent=1 // pred_check
      _
    $region3: #{tpu_custom_call.1} parent=1 // pred_check_branch
      %9 = sbr.rel (0) target = $region5
    $region4: #{tpu_custom_call.1} parent=1 // pred_region
      %s11 = ssub.s32 64, 64
      %12 = vsyncadd [#allocation3], %s11
      %s14 = sshll.u32 [#allocation2], 4
      %s15 = int_to_ptr.vmem [resolvable:$true] %s14
      %17 = dma.hbm_to_vmem [thread:$0]  %s0, 64, %s15, [#allocation3]
    $region5: #{tpu_custom_call.1} parent=1 // pred_fallthru
      _
    // Predicated region
    $region6: #{tpu_custom_call.1} parent=1 // pred_check
      _
    $region7: #{tpu_custom_call.1} parent=1 // pred_check_branch
      %19 = sbr.rel (0) target = $region9
    $region8: #{tpu_custom_call.1} parent=1 // pred_region
      %20 = dma.done [#allocation3], 64
    $region9: #{tpu_custom_call.1} parent=1 // pred_fallthru
      _
    %v21 = vld [vmem:[#allocation2] sm:$0xf]
    %22 = vst [vmem:[#allocation5] sm:$0xf] %v21
    // Predicated region
    $region10: #{tpu_custom_call.1} parent=1 // pred_check
      _
    $region11: #{tpu_custom_call.1} parent=1 // pred_check_branch
      %24 = sbr.rel (0) target = $region13
    $region12: #{tpu_custom_call.1} parent=1 // pred_region
      %s26 = ssub.s32 64, 64
      %27 = vsyncadd [#allocation4], %s26
      %s29 = sshll.u32 [#allocation5], 4
      %s30 = int_to_ptr.vmem [resolvable:$true] %s29
      %32 = dma.vmem_to_hbm [thread:$0]  %s30, 64, %s1, [#allocation4]
    $region13: #{tpu_custom_call.1} parent=1 // pred_fallthru
      _
    // Predicated region
    $region14: #{tpu_custom_call.1} parent=1 // pred_check
      _
    $region15: #{tpu_custom_call.1} parent=1 // pred_check_branch
      %34 = sbr.rel (0) target = $region17
    $region16: #{tpu_custom_call.1} parent=1 // pred_region
      %35 = dma.done [#allocation4], 64
    $region17: #{tpu_custom_call.1} parent=1 // pred_fallthru
      _
    %36 = vsyncpa [#allocation3], 1
    %37 = vsyncpa [#allocation4], 1

</llo_original>
